<compile_context>
chip_gen: v7x
topology: tpu7x:2x2x1
jax: 0.10.0
libtpu: 0.0.40
codegen_flags: <defaults>
</compile_context>

<pallas_src>
import jax
import jax.numpy as jnp
from jax.experimental import pallas as pl
from jax.experimental.pallas import tpu as pltpu

_LANE = 128
_TILE_BYTES_CAP = 2 * 1024 * 1024    # per-block bytes; double-buffered in+out ~ 8 MiB VMEM
_MIN_SPLIT_BYTES = 1 * 1024 * 1024   # above this, force >=2 (even) blocks (v7x has 2 TCs)
_SMALL_FALLBACK_ELEMS = 64 * 1024    # below this, launch overhead dwarfs the stream


def _rsub_int_kernel(x_ref, o_ref):
    # One VPU subtract per vreg; purely HBM-bandwidth-bound.
    o_ref[...] = jnp.asarray(1, dtype=x_ref.dtype) - x_ref[...]


def _choose_block_rows(rows: int, cols: int, itemsize: int) -> int:
    """Rows per block: packed-sublane multiple, ~2 MiB cap, >=2 even blocks when big."""
    packed = max(8, 32 // itemsize)           # 8 for f32, 16 for bf16, 32 for int8/fp8
    bytes_per_row = cols * itemsize
    if rows * bytes_per_row <= _MIN_SPLIT_BYTES:
        return rows                           # single full-extent block (always legal)
    cap_rows = max(packed, (_TILE_BYTES_CAP // bytes_per_row) // packed * packed)
    n_blocks = max(2, pl.cdiv(rows, cap_rows))
    if n_blocks % 2:                          # even block count avoids the 2-TC tail
        n_blocks += 1
    block_rows = pl.cdiv(pl.cdiv(rows, n_blocks), packed) * packed
    return min(block_rows, rows)


def rsub_int(x: jax.Array, *, donate_input: bool = False,
             min_kernel_elems: int = _SMALL_FALLBACK_ELEMS) -> jax.Array:
    """Computes 1 - x with a Pallas TPU kernel. Preserves shape and dtype.

    donate_input=True aliases the input buffer to the output (only safe when the
    caller no longer needs x, e.g. under jax.jit with donated arguments).
    """
    n = x.size
    if n == 0 or n < max(min_kernel_elems, 1):
        return jnp.asarray(1, dtype=x.dtype) - x     # empty / tiny: not worth a launch

    itemsize = jnp.dtype(x.dtype).itemsize
    if n % _LANE == 0:
        rows, cols = n // _LANE, _LANE               # lane-dense fast path
    else:
        cols = x.shape[-1] if x.ndim >= 1 else 1     # full-extent trailing block
        rows = n // cols
        if cols * itemsize > _TILE_BYTES_CAP:
            # Pathological: huge, non-128-aligned trailing dim; plain op is fine.
            return jnp.asarray(1, dtype=x.dtype) - x

    x2d = x.reshape(rows, cols)                      # metadata-only reshape
    block_rows = _choose_block_rows(rows, cols, itemsize)
    grid = (pl.cdiv(rows, block_rows),)

    out2d = pl.pallas_call(
        _rsub_int_kernel,
        out_shape=jax.ShapeDtypeStruct((rows, cols), x.dtype),
        grid=grid,
        in_specs=[pl.BlockSpec((block_rows, cols), lambda i: (i, 0))],
        out_specs=pl.BlockSpec((block_rows, cols), lambda i: (i, 0)),
        compiler_params=pltpu.CompilerParams(
            # Plain "parallel" is sufficient on 1-TC v5e/v6e; if profiling shows
            # one v7x TensorCore idle, switch this axis to pltpu.CORE_PARALLEL.
            dimension_semantics=("parallel",),
        ),
        cost_estimate=pl.CostEstimate(
            flops=n, transcendentals=0, bytes_accessed=2 * n * itemsize),
        input_output_aliases=({0: 0} if donate_input else {}),
    )(x2d)
    return out2d.reshape(x.shape)


if __name__ == "__main__":
    k0, k1, k2, k3 = jax.random.split(jax.random.PRNGKey(0), 4)

    # 1) Small NCHW float input (typical for this module); force the kernel path.
    x = jax.random.normal(k0, (2, 4, 16, 16), dtype=jnp.float32)
    out = jax.block_until_ready(rsub_int(x, min_kernel_elems=512))
    assert out.shape == x.shape and out.dtype == x.dtype
    assert jnp.allclose(out, 1.0 - x)

    # 2) Misaligned element count & non-128 last dim: no pad/slice, full-extent block.
    x_odd = jax.random.normal(k1, (2, 3, 300), dtype=jnp.float32)
    out_odd = jax.block_until_ready(rsub_int(x_odd, min_kernel_elems=512))
    assert jnp.allclose(out_odd, 1.0 - x_odd)

    # 3) Integer dtype (the "Int" in RSubInt): exact result required.
    x_int = jax.random.randint(k2, (4, 9, 33), -50, 50, dtype=jnp.int32)
    out_int = jax.block_until_ready(rsub_int(x_int, min_kernel_elems=512))
    assert out_int.dtype == jnp.int32
    assert jnp.array_equal(out_int, 1 - x_int)

    # 4) >1 MiB input: even multi-block grid so both v7x TCs stream in parallel.
    x_big = jax.random.normal(k3, (96, 64, 64), dtype=jnp.float32)  # ~1.5 MiB
    out_big = jax.block_until_ready(rsub_int(x_big))
    assert jnp.allclose(out_big, 1.0 - x_big)

    # 5) Donated buffer: input/output aliasing removes the fresh output alloc.
    donated_fn = jax.jit(
        lambda a: rsub_int(a, donate_input=True, min_kernel_elems=512),
        donate_argnums=0)
    out_don = jax.block_until_ready(donated_fn(x + 0.0))
    assert jnp.allclose(out_don, 1.0 - x)

    # 6) Tiny-input fallback and empty input still behave.
    x_tiny = jnp.arange(7, dtype=jnp.int32)
    assert jnp.array_equal(rsub_int(x_tiny), 1 - x_tiny)
    x_empty = jnp.zeros((0, 5), dtype=jnp.float32)
    assert rsub_int(x_empty).shape == (0, 5)

    print("KERNEL_OK")
</pallas_src>

<mosaic_0001>
module attributes {stable_mosaic.version = 11 : i64} {
  func.func @_rsub_int_kernel(%arg0: i32, %arg1: memref<16x128xf32, #tpu.memory_space<vmem>>, %arg2: memref<16x128xf32, #tpu.memory_space<vmem>>) attributes {dimension_semantics = [#tpu.dimension_semantics<parallel>], iteration_bounds = array<i64: 1>, scalar_prefetch = 0 : i64, scratch_operands = 0 : i64, tpu.core_type = #tpu.core_type<tc>, window_params = [{transform_indices = @transform_0, window_bounds = array<i64: 16, 128>}, {transform_indices = @transform_1, window_bounds = array<i64: 16, 128>}]} {
    %c0 = arith.constant 0 : index
    %c0_0 = arith.constant 0 : index
    %0 = vector.load %arg1[%c0, %c0_0] : memref<16x128xf32, #tpu.memory_space<vmem>>, vector<16x128xf32>
    %cst = arith.constant 1.000000e+00 : f32
    %1 = vector.broadcast %cst : f32 to vector<16x128xf32>
    %2 = arith.subf %1, %0 : vector<16x128xf32>
    %c0_1 = arith.constant 0 : index
    %c0_2 = arith.constant 0 : index
    %3 = vector.load %arg2[%c0_1, %c0_2] : memref<16x128xf32, #tpu.memory_space<vmem>>, vector<16x128xf32>
    tpu.vector_store %arg2[%c0_1, %c0_2], %2 {strides = array<i32>} : memref<16x128xf32, #tpu.memory_space<vmem>>, vector<16x128xf32>,
    return
  }
  func.func @transform_0(%arg0: i32) -> (i32, i32) {
    %c0_i32 = arith.constant 0 : i32
    %c0_i32_0 = arith.constant 0 : i32
    return %arg0, %c0_i32 : i32, i32
  }
  func.func @transform_1(%arg0: i32) -> (i32, i32) {
    %c0_i32 = arith.constant 0 : i32
    %c0_i32_0 = arith.constant 0 : i32
    return %arg0, %c0_i32 : i32, i32
  }
}

</mosaic_0001>

<llo_original>
// kernel: tpu_custom_call.1
$region0: #{tpu_custom_call.1}
  #allocation0 [shape = 'u32[]', space=smem, size = 0x4, offset = 0x4, fixed_abs, tag = 'smem constant byte address 0x4 - core index']
  #allocation1 [shape = 'u32[144,128]{1,0:T(1,128)}', space=vmem, size = 0x12000, scoped, tag = 'internal scratch']
  %s0 = inlined_call_operand.hbm [shape: f32[16,128], index: 0, kind: input, shape index: {}]
  %s1 = inlined_call_operand.hbm [shape: f32[16,128], index: 1, kind: output, shape index: {}]
  %s2 = sld [smem:[#allocation0]]
  $region18: #{tpu_custom_call.1} parent=0
    _
  %s4 = ssub.s32 1, %s2
  %s5 = scalar_select 0, %s4, %s2
  $region1: #{tpu_custom_call.1} parent=0
    #allocation2 [shape = 'u8[8192]{0}', space=vmem, size = 0x2000, scoped, tag = 'input window, operand 0, single buffered']
    #allocation3 [shape = 's32[1]{0}', space=sflag, size = 0x4, scoped, tag = 'scoped memory for tpu_custom_call.1']
    #allocation4 [shape = 's32[1]{0}', space=sflag, size = 0x4, scoped, tag = 'scoped memory for tpu_custom_call.1']
    #allocation5 [shape = 'u8[8192]{0}', space=vmem, size = 0x2000, scoped, tag = 'output window, operand 0, single buffered']
    %6 = vsyncpa [#allocation3], 0
    %7 = vsyncpa [#allocation4], 0
    // Predicated region
    $region2: #{tpu_custom_call.1} parent=1 // pred_check
      _
    $region3: #{tpu_custom_call.1} parent=1 // pred_check_branch
      %9 = sbr.rel (0) target = $region5
    $region4: #{tpu_custom_call.1} parent=1 // pred_region
      %s11 = ssub.s32 256, 256
      %12 = vsyncadd [#allocation3], %s11
      %s13 = sshll.u32 [#allocation2], 4
      %s14 = int_to_ptr.vmem [resolvable:$true] %s13
      %19 = dma.hbm_to_vmem [thread:$0]  %s0, 256, %s14, [#allocation3], 128, 128, 8
    $region5: #{tpu_custom_call.1} parent=1 // pred_fallthru
      _
    // Predicated region
    $region6: #{tpu_custom_call.1} parent=1 // pred_check
      _
    $region7: #{tpu_custom_call.1} parent=1 // pred_check_branch
      %21 = sbr.rel (0) target = $region9
    $region8: #{tpu_custom_call.1} parent=1 // pred_region
      %22 = dma.done [#allocation3], 256
    $region9: #{tpu_custom_call.1} parent=1 // pred_fallthru
      _
    %v23 = vld [vmem:[#allocation2] sm:$0xff]
    %v24 = vld [vmem:[#allocation2 + $0x8] sm:$0xff]
    %v25 = vsub.f32 1.0, %v23
    %v26 = vsub.f32 1.0, %v24
    %27 = vst [vmem:[#allocation5] sm:$0xff] %v25
    %28 = vst [vmem:[#allocation5 + $0x8] sm:$0xff] %v26
    // Predicated region
    $region10: #{tpu_custom_call.1} parent=1 // pred_check
      _
    $region11: #{tpu_custom_call.1} parent=1 // pred_check_branch
      %30 = sbr.rel (0) target = $region13
    $region12: #{tpu_custom_call.1} parent=1 // pred_region
      %s32 = ssub.s32 256, 256
      %33 = vsyncadd [#allocation4], %s32
      %s34 = sshll.u32 [#allocation5], 4
      %s35 = int_to_ptr.vmem [resolvable:$true] %s34
      %40 = dma.vmem_to_hbm [thread:$0]  %s35, 256, %s1, [#allocation4], 128, 128, 8
    $region13: #{tpu_custom_call.1} parent=1 // pred_fallthru
      _
    // Predicated region
    $region14: #{tpu_custom_call.1} parent=1 // pred_check
      _
    $region15: #{tpu_custom_call.1} parent=1 // pred_check_branch
      %42 = sbr.rel (0) target = $region17
    $region16: #{tpu_custom_call.1} parent=1 // pred_region
      %43 = dma.done [#allocation4], 256
    $region17: #{tpu_custom_call.1} parent=1 // pred_fallthru
      _
    %44 = vsyncpa [#allocation3], 1
    %45 = vsyncpa [#allocation4], 1

</llo_original>
